<compile_context>
chip_gen: v7x
topology: tpu7x:2x2x1
jax: 0.10.0
libtpu: 0.0.40
codegen_flags: <defaults>
</compile_context>

<pallas_src>
import jax
import jax.numpy as jnp
from jax.experimental import pallas as pl
from jax.experimental.pallas import tpu as pltpu


# ------------------------------ Pallas kernel --------------------------------
def bottleneck_kernel(x_ref,     # (NB, H, W*Cin)           bf16
                      w1_ref,    # (W*Cin,  W*width)        bf16  block-diag conv1
                      w2_ref,    # (3*W*width, W*width)     bf16  banded conv2, K-stacked over ky
                      w3_ref,    # (W*width, W*Cout)        bf16  block-diag conv3
                      sb1_ref,   # (NB, 2, W*width)         f32   per-sample [scale; bias]
                      sb2_ref,   # (NB, 2, W*width)         f32
                      sb3_ref,   # (NB, 2, W*Cout)          f32
                      o_ref):    # (NB, H, W*Cout)
    NB, H, WCin = x_ref.shape
    Ww = w1_ref.shape[1]
    WCout = w3_ref.shape[1]
    NBH = NB * H

    x = x_ref[...]                                   # bf16 (NB, H, W*Cin), lane-dense
    x2d = x.reshape(NBH, WCin)

    # Per-sample folded-BN rows: pre-gathered in the wrapper, plain static slices here.
    s1, c1 = sb1_ref[:, 0:1, :], sb1_ref[:, 1:2, :]  # (NB, 1, Ww) f32
    s2, c2 = sb2_ref[:, 0:1, :], sb2_ref[:, 1:2, :]
    s3, c3 = sb3_ref[:, 0:1, :], sb3_ref[:, 1:2, :]  # (NB, 1, WCout)

    # ---- conv1 (1x1) + bn1 + relu : one lane-dense matmul, K = W*Cin ----------
    o1 = jnp.dot(x2d, w1_ref[...], preferred_element_type=jnp.float32)   # (NBH, Ww) f32
    o1 = jnp.maximum(o1.reshape(NB, H, Ww) * s1 + c1, 0.0)

    # ---- conv2 (3x3, pad=1) + bn2 + relu --------------------------------------
    # kx taps live inside the banded weight blocks; ky taps are per-sample H shifts
    # built in bf16 via zero-row concats (no wrap across samples, no iota/mod masks).
    # All three ky taps are stacked along K -> single MXU dot with K = 3*Ww.
    mid = o1.astype(jnp.bfloat16)                              # (NB, H, Ww) bf16
    zrow = jnp.zeros((NB, 1, Ww), jnp.bfloat16)
    dn = jnp.concatenate([zrow, mid[:, :H - 1, :]], axis=1)    # row h reads h-1
    up = jnp.concatenate([mid[:, 1:, :], zrow], axis=1)        # row h reads h+1
    stacked = jnp.concatenate([dn, mid, up], axis=-1).reshape(NBH, 3 * Ww)
    acc = jnp.dot(stacked, w2_ref[...], preferred_element_type=jnp.float32)
    o2 = jnp.maximum(acc.reshape(NB, H, Ww) * s2 + c2, 0.0)

    # ---- conv3 (1x1) + bn3 + residual + relu ----------------------------------
    o3 = jnp.dot(o2.reshape(NBH, Ww).astype(jnp.bfloat16), w3_ref[...],
                 preferred_element_type=jnp.float32)           # (NBH, W*Cout) f32
    o3 = o3.reshape(NB, H, WCout) * s3 + c3
    o3 = jnp.maximum(o3 + x.astype(jnp.float32), 0.0)          # Cin == Cout, stride=1
    o_ref[...] = o3.astype(o_ref.dtype)                        # lane-dense (H, 128) store


# --------------------------- parameter preparation ---------------------------
def fold_bn(gamma, beta, mean, var, eps=1e-5):
    """Fold eval-mode BatchNorm into per-domain (scale, bias): y = x*scale + bias."""
    scale = gamma / jnp.sqrt(var + eps)
    bias = beta - mean * scale
    return jnp.stack([scale, bias], axis=1)              # (num_domains, 2, C)


def prepare_params(w1, w2, w3, sb1, sb2, sb3, W):
    """One-time re-layout of the module's weights into slab (W-folded) form.

    Call this ONCE per weight set (hoisted out of the forward path).
    w1 (Cin, width), w3 (width, Cout): 1x1 convs -> kron(I_W, w)                (bf16)
    w2 (3, 3, width, width) HWIO: 3x3 conv -> per-ky banded kron, K-stacked     (bf16)
    sbX (num_domains, 2, C): folded BN -> tiled along W to (D, 2, W*C)          (f32)
    """
    eye = jnp.eye(W, dtype=jnp.float32)
    w1big = jnp.kron(eye, w1).astype(jnp.bfloat16)                 # (W*Cin,  W*width)
    w3big = jnp.kron(eye, w3).astype(jnp.bfloat16)                 # (W*width, W*Cout)
    # Banded blocks per ky, stacked along K in the order [ky=0 | ky=1 | ky=2] that
    # matches the kernel's [dn | mid | up] activation stacking.
    w2flat = jnp.concatenate(
        [sum(jnp.kron(jnp.eye(W, k=-(kx - 1), dtype=jnp.float32), w2[ky, kx])
             for kx in range(3))
         for ky in range(3)], axis=0).astype(jnp.bfloat16)         # (3*W*width, W*width)
    sb1s = jnp.tile(sb1, (1, 1, W)).astype(jnp.float32)
    sb2s = jnp.tile(sb2, (1, 1, W)).astype(jnp.float32)
    sb3s = jnp.tile(sb3, (1, 1, W)).astype(jnp.float32)
    return w1big, w2flat, w3big, sb1s, sb2s, sb3s


# --------------------------------- wrappers -----------------------------------
def bottleneck_forward_slab(x_slab, domain_indices, params, *, block_n=None,
                            out_dtype=jnp.float32):
    """Core entry point. x_slab: (N, H, W*Cin) bf16 (NHWC with W folded into lanes).

    block_n: samples per grid step.  Default N (single step; best on 1-TC v5e/v6e).
    On v7x use block_n = N//2 (or smaller) so the "parallel" axis shards across both
    TensorCores.  out_dtype: pass jnp.bfloat16 to halve HBM writeback when the
    consumer accepts it (keeps the residual add in f32, casts at the store).
    """
    w1big, w2flat, w3big, sb1s, sb2s, sb3s = params
    N, H, WCin = x_slab.shape
    Ww = w1big.shape[1]
    WCout = w3big.shape[1]
    NB = N if block_n is None else block_n
    assert N % NB == 0

    # Per-sample folded-BN rows gathered here (cheap XLA gather over the (D,2,WC)
    # tables) so the kernel body contains no dynamic indexing at all.
    dom = domain_indices.astype(jnp.int32)
    sb1_n = sb1s[dom]                                  # (N, 2, Ww)
    sb2_n = sb2s[dom]                                  # (N, 2, Ww)
    sb3_n = sb3s[dom]                                  # (N, 2, WCout)

    grid_spec = pltpu.PrefetchScalarGridSpec(
        num_scalar_prefetch=0,
        grid=(N // NB,),                               # NB samples per grid step
        in_specs=[
            pl.BlockSpec((NB, H, WCin), lambda b: (b, 0, 0)),
            # Weights: constant block index -> fetched once, stay resident in VMEM.
            pl.BlockSpec((WCin, Ww), lambda b: (0, 0)),
            pl.BlockSpec((3 * Ww, Ww), lambda b: (0, 0)),
            pl.BlockSpec((Ww, WCout), lambda b: (0, 0)),
            # Per-sample BN rows: batched alongside x.
            pl.BlockSpec((NB, 2, Ww), lambda b: (b, 0, 0)),
            pl.BlockSpec((NB, 2, Ww), lambda b: (b, 0, 0)),
            pl.BlockSpec((NB, 2, WCout), lambda b: (b, 0, 0)),
        ],
        out_specs=pl.BlockSpec((NB, H, WCout), lambda b: (b, 0, 0)),
    )
    return pl.pallas_call(
        bottleneck_kernel,
        out_shape=jax.ShapeDtypeStruct((N, H, WCout), out_dtype),
        grid_spec=grid_spec,
        compiler_params=pltpu.CompilerParams(
            dimension_semantics=("parallel",)),        # batch axis: megacore-shardable
    )(x_slab, w1big, w2flat, w3big, sb1_n, sb2_n, sb3_n)


def bottleneck_forward(x_nchw, domain_indices, params, *, block_n=None):
    """NCHW-compatible entry point (matches the PyTorch module layout).

    `params` must come from prepare_params (hoisted: built once per weight set).
    TODO(synk): in an all-NHWC model keep activations in the (N, H, W*C) slab layout
    across layers and call bottleneck_forward_slab directly; the two transposes below
    are pure layout plumbing that roughly double HBM traffic for this block.
    """
    N, Cin, H, W = x_nchw.shape
    x_slab = (jnp.transpose(x_nchw, (0, 2, 3, 1))
              .reshape(N, H, W * Cin).astype(jnp.bfloat16))
    out = bottleneck_forward_slab(x_slab, domain_indices, params, block_n=block_n)
    WCout = out.shape[-1]
    Cout = WCout // W
    assert Cout == Cin, "residual path requires planes*expansion == inplanes"
    out = out.reshape(N, H, W, Cout)
    return jnp.transpose(out, (0, 3, 1, 2))


# ------------------------- pure-JAX reference (verification) ------------------
def ref_forward(x_nchw, dom, w1, w2, w3, sb1, sb2, sb3):
    # Mirrors the kernel's numerics: bf16 conv inputs, f32 accumulation, f32 BN/relu,
    # bf16-cast identity on the skip connection.
    x = jnp.transpose(x_nchw, (0, 2, 3, 1)).astype(jnp.bfloat16)

    def conv(y, w):
        p = w.shape[0] // 2
        return jax.lax.conv_general_dilated(
            y.astype(jnp.bfloat16), w.astype(jnp.bfloat16), (1, 1), [(p, p), (p, p)],
            dimension_numbers=("NHWC", "HWIO", "NHWC"),
            preferred_element_type=jnp.float32)

    def bn(y, sb):
        s = sb[dom, 0][:, None, None, :]
        b = sb[dom, 1][:, None, None, :]
        return y * s + b

    Cin, width = w1.shape
    Cout = w3.shape[1]
    o = jax.nn.relu(bn(conv(x, w1.reshape(1, 1, Cin, width)), sb1))
    o = jax.nn.relu(bn(conv(o, w2), sb2))
    o = bn(conv(o, w3.reshape(1, 1, width, Cout)), sb3)
    o = jax.nn.relu(o + x.astype(jnp.float32))
    return jnp.transpose(o, (0, 3, 1, 2))


if __name__ == "__main__":
    # Bottleneck(inplanes=16, planes=4, num_domains=2): width=4, Cout=16.
    N, H, W = 4, 8, 8
    inplanes, planes = 16, 4
    width = planes                      # groups=1, base_width=64
    Cout = planes * 4                   # expansion = 4
    num_domains = 2

    key = jax.random.PRNGKey(0)
    ks = jax.random.split(key, 8)

    x = jax.random.normal(ks[0], (N, inplanes, H, W), jnp.float32)
    domain_indices = jnp.array([0, 1, 1, 0], dtype=jnp.int32)

    # conv weights stored in kernel layout: 1x1 as (Cin, Cout), 3x3 as HWIO.
    w1 = jax.random.normal(ks[1], (inplanes, width), jnp.float32) * 0.1
    w2 = jax.random.normal(ks[2], (3, 3, width, width), jnp.float32) * 0.1
    w3 = jax.random.normal(ks[3], (width, Cout), jnp.float32) * 0.1

    def bn_params(k, C):
        k1, k2, k3, k4 = jax.random.split(k, 4)
        gamma = 1.0 + 0.1 * jax.random.normal(k1, (num_domains, C), jnp.float32)
        beta = 0.1 * jax.random.normal(k2, (num_domains, C), jnp.float32)
        mean = 0.1 * jax.random.normal(k3, (num_domains, C), jnp.float32)
        var = jnp.abs(jax.random.normal(k4, (num_domains, C), jnp.float32)) + 0.5
        return fold_bn(gamma, beta, mean, var)

    sb1 = bn_params(ks[4], width)
    sb2 = bn_params(ks[5], width)
    sb3 = bn_params(ks[6], Cout)

    # Hoisted one-time weight re-layout (review: not per forward call).
    params = prepare_params(w1, w2, w3, sb1, sb2, sb3, W)

    # Single grid step (block_n defaults to N): best on 1-TC v5e/v6e.
    # On v7x pass block_n=N//2 so both TensorCores get parallel grid steps.
    fwd = jax.jit(lambda xs, dm: bottleneck_forward(xs, dm, params))
    out = jax.block_until_ready(fwd(x, domain_indices))

    ref = jax.block_until_ready(
        ref_forward(x, domain_indices, w1, w2, w3, sb1, sb2, sb3))

    assert out.shape == (N, Cout, H, W)
    err = float(jnp.max(jnp.abs(out - ref)))
    assert jnp.allclose(out, ref, atol=1e-2, rtol=1e-2), f"max abs err = {err}"
    print("KERNEL_OK")
</pallas_src>

<mosaic_0001>
module attributes {stable_mosaic.version = 11 : i64} {
  func.func @bottleneck_kernel(%arg0: i32, %arg1: memref<4x8x128xbf16, #tpu.memory_space<vmem>>, %arg2: memref<128x32xbf16, #tpu.memory_space<vmem>>, %arg3: memref<96x32xbf16, #tpu.memory_space<vmem>>, %arg4: memref<32x128xbf16, #tpu.memory_space<vmem>>, %arg5: memref<4x2x32xf32, #tpu.memory_space<vmem>>, %arg6: memref<4x2x32xf32, #tpu.memory_space<vmem>>, %arg7: memref<4x2x128xf32, #tpu.memory_space<vmem>>, %arg8: memref<4x8x128xf32, #tpu.memory_space<vmem>>) attributes {dimension_semantics = [#tpu.dimension_semantics<parallel>], iteration_bounds = array<i64: 1>, scalar_prefetch = 0 : i64, scratch_operands = 0 : i64, tpu.core_type = #tpu.core_type<tc>, window_params = [{transform_indices = @transform_0, window_bounds = array<i64: 4, 8, 128>}, {pipeline_mode = #tpu.pipeline_mode<synchronous>, transform_indices = @transform_1, window_bounds = array<i64: 128, 32>}, {pipeline_mode = #tpu.pipeline_mode<synchronous>, transform_indices = @transform_2, window_bounds = array<i64: 96, 32>}, {pipeline_mode = #tpu.pipeline_mode<synchronous>, transform_indices = @transform_3, window_bounds = array<i64: 32, 128>}, {transform_indices = @transform_4, window_bounds = array<i64: 4, 2, 32>}, {transform_indices = @transform_5, window_bounds = array<i64: 4, 2, 32>}, {transform_indices = @transform_6, window_bounds = array<i64: 4, 2, 128>}, {transform_indices = @transform_7, window_bounds = array<i64: 4, 8, 128>}]} {
    %c0 = arith.constant 0 : index
    %c0_0 = arith.constant 0 : index
    %c0_1 = arith.constant 0 : index
    %0 = vector.load %arg1[%c0, %c0_0, %c0_1] : memref<4x8x128xbf16, #tpu.memory_space<vmem>>, vector<4x8x128xbf16>
    %1 = vector.shape_cast %0 : vector<4x8x128xbf16> to vector<32x128xbf16>
    %c0_2 = arith.constant 0 : index
    %c0_3 = arith.constant 0 : index
    %c0_4 = arith.constant 0 : index
    %2 = vector.load %arg5[%c0_2, %c0_3, %c0_4] : memref<4x2x32xf32, #tpu.memory_space<vmem>>, vector<4x1x32xf32>
    %c0_5 = arith.constant 0 : index
    %c1 = arith.constant 1 : index
    %c0_6 = arith.constant 0 : index
    %3 = vector.load %arg5[%c0_5, %c1, %c0_6] : memref<4x2x32xf32, #tpu.memory_space<vmem>>, vector<4x1x32xf32>
    %c0_7 = arith.constant 0 : index
    %c0_8 = arith.constant 0 : index
    %c0_9 = arith.constant 0 : index
    %4 = vector.load %arg6[%c0_7, %c0_8, %c0_9] : memref<4x2x32xf32, #tpu.memory_space<vmem>>, vector<4x1x32xf32>
    %c0_10 = arith.constant 0 : index
    %c1_11 = arith.constant 1 : index
    %c0_12 = arith.constant 0 : index
    %5 = vector.load %arg6[%c0_10, %c1_11, %c0_12] : memref<4x2x32xf32, #tpu.memory_space<vmem>>, vector<4x1x32xf32>
    %c0_13 = arith.constant 0 : index
    %c0_14 = arith.constant 0 : index
    %c0_15 = arith.constant 0 : index
    %6 = vector.load %arg7[%c0_13, %c0_14, %c0_15] : memref<4x2x128xf32, #tpu.memory_space<vmem>>, vector<4x1x128xf32>
    %c0_16 = arith.constant 0 : index
    %c1_17 = arith.constant 1 : index
    %c0_18 = arith.constant 0 : index
    %7 = vector.load %arg7[%c0_16, %c1_17, %c0_18] : memref<4x2x128xf32, #tpu.memory_space<vmem>>, vector<4x1x128xf32>
    %c0_19 = arith.constant 0 : index
    %c0_20 = arith.constant 0 : index
    %8 = vector.load %arg2[%c0_19, %c0_20] : memref<128x32xbf16, #tpu.memory_space<vmem>>, vector<128x32xbf16>
    %cst = arith.constant dense<0.000000e+00> : vector<32x32xf32>
    %9 = tpu.matmul %1, %8, %cst {dimension_numbers = #tpu.dot_dimension_numbers<[1], [0], [0], [1], [0, 0, 1, 1], [], []>} : vector<32x128xbf16>, vector<128x32xbf16>, vector<32x32xf32> -> vector<32x32xf32>
    %10 = vector.shape_cast %9 : vector<32x32xf32> to vector<4x8x32xf32>
    %11 = vector.broadcast %2 : vector<4x1x32xf32> to vector<4x8x32xf32>
    %12 = arith.mulf %10, %11 : vector<4x8x32xf32>
    %13 = vector.broadcast %3 : vector<4x1x32xf32> to vector<4x8x32xf32>
    %14 = arith.addf %12, %13 : vector<4x8x32xf32>
    %cst_21 = arith.constant 0.000000e+00 : f32
    %15 = vector.broadcast %cst_21 : f32 to vector<4x8x32xf32>
    %16 = arith.maximumf %14, %15 : vector<4x8x32xf32>
    %17 = arith.truncf %16 : vector<4x8x32xf32> to vector<4x8x32xbf16>
    %cst_22 = arith.constant 0.000000e+00 : bf16
    %18 = vector.broadcast %cst_22 : bf16 to vector<4x1x32xbf16>
    %19 = vector.extract_strided_slice %17 {offsets = [0, 0, 0], sizes = [4, 7, 32], strides = [1, 1, 1]} : vector<4x8x32xbf16> to vector<4x7x32xbf16>
    %20 = tpu.concatenate %18, %19 in 1 : vector<4x1x32xbf16>, vector<4x7x32xbf16> -> vector<4x8x32xbf16>
    %21 = vector.extract_strided_slice %17 {offsets = [0, 1, 0], sizes = [4, 7, 32], strides = [1, 1, 1]} : vector<4x8x32xbf16> to vector<4x7x32xbf16>
    %22 = tpu.concatenate %21, %18 in 1 : vector<4x7x32xbf16>, vector<4x1x32xbf16> -> vector<4x8x32xbf16>
    %23 = tpu.concatenate %20, %17, %22 in 2 : vector<4x8x32xbf16>, vector<4x8x32xbf16>, vector<4x8x32xbf16> -> vector<4x8x96xbf16>
    %24 = vector.shape_cast %23 : vector<4x8x96xbf16> to vector<32x96xbf16>
    %c0_23 = arith.constant 0 : index
    %c0_24 = arith.constant 0 : index
    %25 = vector.load %arg3[%c0_23, %c0_24] : memref<96x32xbf16, #tpu.memory_space<vmem>>, vector<96x32xbf16>
    %cst_25 = arith.constant dense<0.000000e+00> : vector<32x32xf32>
    %26 = tpu.matmul %24, %25, %cst_25 {dimension_numbers = #tpu.dot_dimension_numbers<[1], [0], [0], [1], [0, 0, 1, 1], [], []>} : vector<32x96xbf16>, vector<96x32xbf16>, vector<32x32xf32> -> vector<32x32xf32>
    %27 = vector.shape_cast %26 : vector<32x32xf32> to vector<4x8x32xf32>
    %28 = vector.broadcast %4 : vector<4x1x32xf32> to vector<4x8x32xf32>
    %29 = arith.mulf %27, %28 : vector<4x8x32xf32>
    %30 = vector.broadcast %5 : vector<4x1x32xf32> to vector<4x8x32xf32>
    %31 = arith.addf %29, %30 : vector<4x8x32xf32>
    %cst_26 = arith.constant 0.000000e+00 : f32
    %32 = vector.broadcast %cst_26 : f32 to vector<4x8x32xf32>
    %33 = arith.maximumf %31, %32 : vector<4x8x32xf32>
    %34 = vector.shape_cast %33 : vector<4x8x32xf32> to vector<32x32xf32>
    %35 = arith.truncf %34 : vector<32x32xf32> to vector<32x32xbf16>
    %c0_27 = arith.constant 0 : index
    %c0_28 = arith.constant 0 : index
    %36 = vector.load %arg4[%c0_27, %c0_28] : memref<32x128xbf16, #tpu.memory_space<vmem>>, vector<32x128xbf16>
    %cst_29 = arith.constant dense<0.000000e+00> : vector<32x128xf32>
    %37 = tpu.matmul %35, %36, %cst_29 {dimension_numbers = #tpu.dot_dimension_numbers<[1], [0], [0], [1], [0, 0, 1, 1], [], []>} : vector<32x32xbf16>, vector<32x128xbf16>, vector<32x128xf32> -> vector<32x128xf32>
    %38 = vector.shape_cast %37 : vector<32x128xf32> to vector<4x8x128xf32>
    %39 = vector.broadcast %6 : vector<4x1x128xf32> to vector<4x8x128xf32>
    %40 = arith.mulf %38, %39 : vector<4x8x128xf32>
    %41 = vector.broadcast %7 : vector<4x1x128xf32> to vector<4x8x128xf32>
    %42 = arith.addf %40, %41 : vector<4x8x128xf32>
    %43 = arith.extf %0 : vector<4x8x128xbf16> to vector<4x8x128xf32>
    %44 = arith.addf %42, %43 : vector<4x8x128xf32>
    %cst_30 = arith.constant 0.000000e+00 : f32
    %45 = vector.broadcast %cst_30 : f32 to vector<4x8x128xf32>
    %46 = arith.maximumf %44, %45 : vector<4x8x128xf32>
    %c0_31 = arith.constant 0 : index
    %c0_32 = arith.constant 0 : index
    %c0_33 = arith.constant 0 : index
    %47 = vector.load %arg8[%c0_31, %c0_32, %c0_33] : memref<4x8x128xf32, #tpu.memory_space<vmem>>, vector<4x8x128xf32>
    tpu.vector_store %arg8[%c0_31, %c0_32, %c0_33], %46 {strides = array<i32>} : memref<4x8x128xf32, #tpu.memory_space<vmem>>, vector<4x8x128xf32>,
    return
  }
  func.func @transform_0(%arg0: i32) -> (i32, i32, i32) {
    %c0_i32 = arith.constant 0 : i32
    %c0_i32_0 = arith.constant 0 : i32
    %c0_i32_1 = arith.constant 0 : i32
    return %arg0, %c0_i32, %c0_i32_0 : i32, i32, i32
  }
  func.func @transform_1(%arg0: i32) -> (i32, i32) {
    %c0_i32 = arith.constant 0 : i32
    %c0_i32_0 = arith.constant 0 : i32
    %c0_i32_1 = arith.constant 0 : i32
    return %c0_i32, %c0_i32_0 : i32, i32
  }
  func.func @transform_2(%arg0: i32) -> (i32, i32) {
    %c0_i32 = arith.constant 0 : i32
    %c0_i32_0 = arith.constant 0 : i32
    %c0_i32_1 = arith.constant 0 : i32
    return %c0_i32, %c0_i32_0 : i32, i32
  }
  func.func @transform_3(%arg0: i32) -> (i32, i32) {
    %c0_i32 = arith.constant 0 : i32
    %c0_i32_0 = arith.constant 0 : i32
    %c0_i32_1 = arith.constant 0 : i32
    return %c0_i32, %c0_i32_0 : i32, i32
  }
  func.func @transform_4(%arg0: i32) -> (i32, i32, i32) {
    %c0_i32 = arith.constant 0 : i32
    %c0_i32_0 = arith.constant 0 : i32
    %c0_i32_1 = arith.constant 0 : i32
    return %arg0, %c0_i32, %c0_i32_0 : i32, i32, i32
  }
  func.func @transform_5(%arg0: i32) -> (i32, i32, i32) {
    %c0_i32 = arith.constant 0 : i32
    %c0_i32_0 = arith.constant 0 : i32
    %c0_i32_1 = arith.constant 0 : i32
    return %arg0, %c0_i32, %c0_i32_0 : i32, i32, i32
  }
  func.func @transform_6(%arg0: i32) -> (i32, i32, i32) {
    %c0_i32 = arith.constant 0 : i32
    %c0_i32_0 = arith.constant 0 : i32
    %c0_i32_1 = arith.constant 0 : i32
    return %arg0, %c0_i32, %c0_i32_0 : i32, i32, i32
  }
  func.func @transform_7(%arg0: i32) -> (i32, i32, i32) {
    %c0_i32 = arith.constant 0 : i32
    %c0_i32_0 = arith.constant 0 : i32
    %c0_i32_1 = arith.constant 0 : i32
    return %arg0, %c0_i32, %c0_i32_0 : i32, i32, i32
  }
}

</mosaic_0001>

<llo_original>
// kernel: _lambda_.1
$region0: #{_lambda_.1}
  #allocation0 [shape = 'u32[]', space=smem, size = 0x4, offset = 0x4, fixed_abs, tag = 'smem constant byte address 0x4 - core index']
  #allocation1 [shape = 'u32[144,128]{1,0:T(1,128)}', space=vmem, size = 0x12000, scoped, tag = 'internal scratch']
  %s0 = inlined_call_operand.vmem [shape: bf16[4,8,128], index: 0, kind: input, shape index: {}]
  %s1 = inlined_call_operand.vmem [shape: bf16[128,32], index: 1, kind: input, shape index: {}]
  %s2 = inlined_call_operand.vmem [shape: bf16[96,32], index: 2, kind: input, shape index: {}]
  %s3 = inlined_call_operand.vmem [shape: bf16[32,128], index: 3, kind: input, shape index: {}]
  %s4 = inlined_call_operand.vmem [shape: f32[4,2,32], index: 4, kind: input, shape index: {}]
  %s5 = inlined_call_operand.vmem [shape: f32[4,2,32], index: 5, kind: input, shape index: {}]
  %s6 = inlined_call_operand.vmem [shape: f32[4,2,128], index: 6, kind: input, shape index: {}]
  %s7 = inlined_call_operand.vmem [shape: f32[4,8,128], index: 7, kind: output, shape index: {}]
  %s8 = sld [smem:[#allocation0]]
  $region38: #{_lambda_.1} parent=0
    _
  %s10 = ssub.s32 1, %s8
  %s11 = scalar_select 0, %s10, %s8
  // Predicated region
  $region2: #{_lambda_.1} parent=0 // pred_check
    _
  $region3: #{_lambda_.1} parent=0 // pred_check_branch
    %13 = sbr.rel (0) target = $region5
  $region4: #{_lambda_.1} parent=0 // pred_region
    _
  $region5: #{_lambda_.1} parent=0 // pred_fallthru
    _
  // Predicated region
  $region6: #{_lambda_.1} parent=0 // pred_check
    _
  $region7: #{_lambda_.1} parent=0 // pred_check_branch
    %15 = sbr.rel (0) target = $region9
  $region8: #{_lambda_.1} parent=0 // pred_region
    _
  $region9: #{_lambda_.1} parent=0 // pred_fallthru
    _
  // Predicated region
  $region10: #{_lambda_.1} parent=0 // pred_check
    _
  $region11: #{_lambda_.1} parent=0 // pred_check_branch
    %17 = sbr.rel (0) target = $region13
  $region12: #{_lambda_.1} parent=0 // pred_region
    _
  $region13: #{_lambda_.1} parent=0 // pred_fallthru
    _
  // Predicated region
  $region14: #{_lambda_.1} parent=0 // pred_check
    _
  $region15: #{_lambda_.1} parent=0 // pred_check_branch
    %19 = sbr.rel (0) target = $region17
  $region16: #{_lambda_.1} parent=0 // pred_region
    _
  $region17: #{_lambda_.1} parent=0 // pred_fallthru
    _
  // Predicated region
  $region18: #{_lambda_.1} parent=0 // pred_check
    _
  $region19: #{_lambda_.1} parent=0 // pred_check_branch
    %21 = sbr.rel (0) target = $region21
  $region20: #{_lambda_.1} parent=0 // pred_region
    _
  $region21: #{_lambda_.1} parent=0 // pred_fallthru
    _
  // Predicated region
  $region22: #{_lambda_.1} parent=0 // pred_check
    _
  $region23: #{_lambda_.1} parent=0 // pred_check_branch
    %23 = sbr.rel (0) target = $region25
  $region24: #{_lambda_.1} parent=0 // pred_region
    _
  $region25: #{_lambda_.1} parent=0 // pred_fallthru
    _
  // Predicated region
  $region26: #{_lambda_.1} parent=0 // pred_check
    _
  $region27: #{_lambda_.1} parent=0 // pred_check_branch
    %25 = sbr.rel (0) target = $region29
  $region28: #{_lambda_.1} parent=0 // pred_region
    _
  $region29: #{_lambda_.1} parent=0 // pred_fallthru
    _
  %v27 = vld [vmem:[%s0] sm:$0xf]
  %v28 = vld [vmem:[%s0 + $0x4] sm:$0xf]
  %v29 = vld [vmem:[%s0 + $0x8] sm:$0xf]
  %v30 = vld [vmem:[%s0 + $0xc] sm:$0xf]
  %v31 = vld [vmem:[%s4] sm:$0x1]
  %v32 = vld [vmem:[%s4 + $0x2] sm:$0x1]
  %v33 = vld [vmem:[%s4 + $0x4] sm:$0x1]
  %v34 = vld [vmem:[%s4 + $0x6] sm:$0x1]
  %v35 = vld [vmem:[%s4 + $0x1] sm:$0x1]
  %v36 = vld [vmem:[%s4 + $0x3] sm:$0x1]
  %v37 = vld [vmem:[%s4 + $0x5] sm:$0x1]
  %v38 = vld [vmem:[%s4 + $0x7] sm:$0x1]
  %v39 = vld [vmem:[%s5] sm:$0x1]
  %v40 = vld [vmem:[%s5 + $0x2] sm:$0x1]
  %v41 = vld [vmem:[%s5 + $0x4] sm:$0x1]
  %v42 = vld [vmem:[%s5 + $0x6] sm:$0x1]
  %v43 = vld [vmem:[%s5 + $0x1] sm:$0x1]
  %v44 = vld [vmem:[%s5 + $0x3] sm:$0x1]
  %v45 = vld [vmem:[%s5 + $0x5] sm:$0x1]
  %v46 = vld [vmem:[%s5 + $0x7] sm:$0x1]
  %v47 = vld [vmem:[%s6] sm:$0x1]
  %v48 = vld [vmem:[%s6 + $0x2] sm:$0x1]
  %v49 = vld [vmem:[%s6 + $0x4] sm:$0x1]
  %v50 = vld [vmem:[%s6 + $0x6] sm:$0x1]
  %v51 = vld [vmem:[%s6 + $0x1] sm:$0x1]
  %v52 = vld [vmem:[%s6 + $0x3] sm:$0x1]
  %v53 = vld [vmem:[%s6 + $0x5] sm:$0x1]
  %v54 = vld [vmem:[%s6 + $0x7] sm:$0x1]
  %v55 = vld [vmem:[%s1] sm:$0xf]
  %v56 = vld [vmem:[%s1 + $0x4] sm:$0xf]
  %v57 = vld [vmem:[%s1 + $0x8] sm:$0xf]
  %v58 = vld [vmem:[%s1 + $0xc] sm:$0xf]
  %v59 = vld [vmem:[%s1 + $0x10] sm:$0xf]
  %v60 = vld [vmem:[%s1 + $0x14] sm:$0xf]
  %v61 = vld [vmem:[%s1 + $0x18] sm:$0xf]
  %v62 = vld [vmem:[%s1 + $0x1c] sm:$0xf]
  %v63 = vld [vmem:[%s1 + $0x20] sm:$0xf]
  %v64 = vld [vmem:[%s1 + $0x24] sm:$0xf]
  %v65 = vld [vmem:[%s1 + $0x28] sm:$0xf]
  %v66 = vld [vmem:[%s1 + $0x2c] sm:$0xf]
  %v67 = vld [vmem:[%s1 + $0x30] sm:$0xf]
  %v68 = vld [vmem:[%s1 + $0x34] sm:$0xf]
  %v69 = vld [vmem:[%s1 + $0x38] sm:$0xf]
  %v70 = vld [vmem:[%s1 + $0x3c] sm:$0xf]
  %v75 = vunpack.c.l.b16 %v27
  %v76 = vunpack.c.l.b16 %v28
  %v77 = vunpack.c.l.b16 %v29
  %v78 = vunpack.c.l.b16 %v30
  %v79 = vpack.c.b16 %v76, %v75
  %v80 = vpack.c.b16 %v78, %v77
  %v99 = vunpack.c.l.b16 %v55
  %v100 = vunpack.c.l.b16 %v56
  %v101 = vunpack.c.l.b16 %v57
  %v102 = vunpack.c.l.b16 %v58
  %v103 = vunpack.c.l.b16 %v59
  %v104 = vunpack.c.l.b16 %v60
  %v105 = vunpack.c.l.b16 %v61
  %v106 = vunpack.c.l.b16 %v62
  %v107 = vunpack.c.l.b16 %v63
  %v108 = vunpack.c.l.b16 %v64
  %v109 = vunpack.c.l.b16 %v65
  %v110 = vunpack.c.l.b16 %v66
  %v111 = vunpack.c.l.b16 %v67
  %v112 = vunpack.c.l.b16 %v68
  %v113 = vunpack.c.l.b16 %v69
  %v114 = vunpack.c.l.b16 %v70
  %v115 = vpack.c.b16 %v100, %v99
  %v116 = vpack.c.b16 %v102, %v101
  %v117 = vpack.c.b16 %v104, %v103
  %v118 = vpack.c.b16 %v106, %v105
  %v119 = vpack.c.b16 %v108, %v107
  %v120 = vpack.c.b16 %v110, %v109
  %v121 = vpack.c.b16 %v112, %v111
  %v122 = vpack.c.b16 %v114, %v113
  %131 = vmatprep.subr.bf16.mxu0 0
  %132 = vmatpush1.bf16.msra.mxu0 %v115
  %133 = vmatprep.subr.bf16.mxu0 0
  %134 = vmatpush1.bf16.msra.mxu0 %v116
  %135 = vmatprep.subr.bf16.mxu0 0
  %136 = vmatpush1.bf16.msra.mxu0 %v117
  %137 = vmatprep.subr.bf16.mxu0 0
  %138 = vmatpush1.bf16.msra.mxu0 %v118
  %139 = vmatprep.subr.bf16.mxu0 0
  %140 = vmatpush1.bf16.msra.mxu0 %v119
  %141 = vmatprep.subr.bf16.mxu0 0
  %142 = vmatpush1.bf16.msra.mxu0 %v120
  %143 = vmatprep.subr.bf16.mxu0 0
  %144 = vmatpush1.bf16.msra.mxu0 %v121
  %145 = vmatprep.subr.bf16.mxu0 0
  %146 = vmatpush1.bf16.msra.mxu0 %v122
  %147 = vmatprep.subr.bf16.mxu0 0
  %148 = vmatpush1.bf16.msra.mxu0 0
  %149 = vmatprep.subr.bf16.mxu0 0
  %150 = vmatpush1.bf16.msra.mxu0 0
  %151 = vmatprep.subr.bf16.mxu0 0
  %152 = vmatpush1.bf16.msra.mxu0 0
  %153 = vmatprep.subr.bf16.mxu0 0
  %154 = vmatpush1.bf16.msra.mxu0 0
  %155 = vmatprep.subr.bf16.mxu0 0
  %156 = vmatpush1.bf16.msra.mxu0 0
  %157 = vmatprep.subr.bf16.mxu0 0
  %158 = vmatpush1.bf16.msra.mxu0 0
  %159 = vmatprep.subr.bf16.mxu0 0
  %160 = vmatpush1.bf16.msra.mxu0 0
  %161 = vmatprep.subr.bf16.mxu0 0
  %162 = vmatpush1.bf16.msra.mxu0 0
  %163 = vmatprep.mubr.bf16.mxu0 0
  %164 = vmatmul.mubr.bf16.gmra.mrb[0].mxu0 %v79
  %v165 = vpop.f32.mrb[0].mxu0
  %v166 = vadd.f32 0.0, %v165
  %v167 = vpop.f32.mrb[0].mxu0
  %v168 = vpop.f32.mrb[0].mxu0
  %v169 = vadd.f32 0.0, %v168
  %v170 = vpop.f32.mrb[0].mxu0
  %171 = vmatprep.mubr.bf16.mxu0 0
  %172 = vmatmul.mubr.bf16.gmra.mrb[0].mxu0 %v80
  %v173 = vpop.f32.mrb[0].mxu0
  %v174 = vadd.f32 0.0, %v173
  %v175 = vpop.f32.mrb[0].mxu0
  %v176 = vpop.f32.mrb[0].mxu0
  %v177 = vadd.f32 0.0, %v176
  %v178 = vpop.f32.mrb[0].mxu0
  %179 = vdwg.mxu0
  %v180 = vlaneseq
  %v181 = vshrl.u32 %v180, 7
  %v182 = vsub.s32 0, %v181
  %v183 = vrot.slane %v31, %v182
  %v184 = vlaneseq
  %v185 = vshrl.u32 %v184, 7
  %v186 = vsub.s32 0, %v185
  %v187 = vrot.slane %v32, %v186
  %v188 = vlaneseq
  %v189 = vshrl.u32 %v188, 7
  %v190 = vsub.s32 0, %v189
  %v191 = vrot.slane %v33, %v190
  %v192 = vlaneseq
  %v193 = vshrl.u32 %v192, 7
  %v194 = vsub.s32 0, %v193
  %v195 = vrot.slane %v34, %v194
  %v196 = vmul.f32 %v166, %v183
  %v197 = vmul.f32 %v169, %v187
  %v198 = vmul.f32 %v174, %v191
  %v199 = vmul.f32 %v177, %v195
  %v200 = vlaneseq
  %v201 = vshrl.u32 %v200, 7
  %v202 = vsub.s32 0, %v201
  %v203 = vrot.slane %v35, %v202
  %v204 = vlaneseq
  %v205 = vshrl.u32 %v204, 7
  %v206 = vsub.s32 0, %v205
  %v207 = vrot.slane %v36, %v206
  %v208 = vlaneseq
  %v209 = vshrl.u32 %v208, 7
  %v210 = vsub.s32 0, %v209
  %v211 = vrot.slane %v37, %v210
  %v212 = vlaneseq
  %v213 = vshrl.u32 %v212, 7
  %v214 = vsub.s32 0, %v213
  %v215 = vrot.slane %v38, %v214
  %v216 = vadd.f32 %v196, %v203
  %v217 = vadd.f32 %v197, %v207
  %v218 = vadd.f32 %v198, %v211
  %v219 = vadd.f32 %v199, %v215
  %v220 = vmax.f32 %v216, 0.0
  %v221 = vmax.f32 %v217, 0.0
  %v222 = vmax.f32 %v218, 0.0
  %v223 = vmax.f32 %v219, 0.0
  %v224 = vpack.c.bf16 %v220, %v220
  %v225 = vpack.c.bf16 %v221, %v221
  %v226 = vpack.c.bf16 %v222, %v222
  %v227 = vpack.c.bf16 %v223, %v223
  %v229 = vshrl.u32 %v224, 16
  %v231 = vrot.slane %v229, 7
  %v232 = vshll.u32 %v224, 16
  %v234 = vor.u32 %v231, %v232
  %v236 = vshrl.u32 %v225, 16
  %v238 = vrot.slane %v236, 7
  %v239 = vshll.u32 %v225, 16
  %v241 = vor.u32 %v238, %v239
  %v243 = vshrl.u32 %v226, 16
  %v245 = vrot.slane %v243, 7
  %v246 = vshll.u32 %v226, 16
  %v248 = vor.u32 %v245, %v246
  %v250 = vshrl.u32 %v227, 16
  %v252 = vrot.slane %v250, 7
  %v253 = vshll.u32 %v227, 16
  %v255 = vor.u32 %v252, %v253
  %vm260 = vcmask 1040384
  %vm261 = vsmask.f32 256
  %vm262 = vmand %vm260, %vm261
  %v263 = vsel %vm262, 0, %v234
  %v264 = vsel %vm262, 0, %v241
  %v265 = vsel %vm262, 0, %v248
  %v266 = vsel %vm262, 0, %v255
  %v267 = vrot.slane %v232, 1
  %v268 = vor.u32 %v229, %v267
  %v269 = vrot.slane %v239, 1
  %v270 = vor.u32 %v236, %v269
  %v271 = vrot.slane %v246, 1
  %v272 = vor.u32 %v243, %v271
  %v273 = vrot.slane %v253, 1
  %v274 = vor.u32 %v250, %v273
  %vm279 = vcmask 1043456
  %vm280 = vsmask.f32 3328
  %vm281 = vmand %vm279, %vm280
  %v282 = vsel %vm281, %v268, 0
  %v283 = vsel %vm281, %v270, 0
  %v284 = vsel %vm281, %v272, 0
  %v285 = vsel %vm281, %v274, 0
  %290 = vrot.lane.b32.xlu0 %v224, 32
  %v291 = vpop.permute.xlu0 %290
  %292 = vrot.lane.b32.xlu0 %v225, 32
  %v293 = vpop.permute.xlu0 %292
  %294 = vrot.lane.b32.xlu0 %v226, 32
  %v295 = vpop.permute.xlu0 %294
  %296 = vrot.lane.b32.xlu0 %v227, 32
  %v297 = vpop.permute.xlu0 %296
  %302 = vrot.lane.b32.xlu0 %v282, 64
  %v303 = vpop.permute.xlu0 %302
  %304 = vrot.lane.b32.xlu0 %v283, 64
  %v305 = vpop.permute.xlu0 %304
  %306 = vrot.lane.b32.xlu0 %v284, 64
  %v307 = vpop.permute.xlu0 %306
  %308 = vrot.lane.b32.xlu0 %v285, 64
  %v309 = vpop.permute.xlu0 %308
  %vm310 = vcmask 261120
  %v313 = vsel %vm310, %v263, %v291
  %v316 = vsel %vm310, %v264, %v293
  %v319 = vsel %vm310, %v265, %v295
  %v322 = vsel %vm310, %v266, %v297
  %vm323 = vcmask 523264
  %v325 = vsel %vm323, %v313, %v303
  %v327 = vsel %vm323, %v316, %v305
  %v329 = vsel %vm323, %v319, %v307
  %v331 = vsel %vm323, %v322, %v309
  %v332 = vld [vmem:[%s2] sm:$0xf]
  %v333 = vld [vmem:[%s2 + $0x4] sm:$0xf]
  %v334 = vld [vmem:[%s2 + $0x8] sm:$0xf]
  %v335 = vld [vmem:[%s2 + $0xc] sm:$0xf]
  %v336 = vld [vmem:[%s2 + $0x10] sm:$0xf]
  %v337 = vld [vmem:[%s2 + $0x14] sm:$0xf]
  %v338 = vld [vmem:[%s2 + $0x18] sm:$0xf]
  %v339 = vld [vmem:[%s2 + $0x1c] sm:$0xf]
  %v340 = vld [vmem:[%s2 + $0x20] sm:$0xf]
  %v341 = vld [vmem:[%s2 + $0x24] sm:$0xf]
  %v342 = vld [vmem:[%s2 + $0x28] sm:$0xf]
  %v343 = vld [vmem:[%s2 + $0x2c] sm:$0xf]
  %v348 = vunpack.c.l.b16 %v325
  %v349 = vunpack.c.l.b16 %v327
  %v350 = vunpack.c.l.b16 %v329
  %v351 = vunpack.c.l.b16 %v331
  %v352 = vpack.c.b16 %v349, %v348
  %v353 = vpack.c.b16 %v351, %v350
  %v366 = vunpack.c.l.b16 %v332
  %v367 = vunpack.c.l.b16 %v333
  %v368 = vunpack.c.l.b16 %v334
  %v369 = vunpack.c.l.b16 %v335
  %v370 = vunpack.c.l.b16 %v336
  %v371 = vunpack.c.l.b16 %v337
  %v372 = vunpack.c.l.b16 %v338
  %v373 = vunpack.c.l.b16 %v339
  %v374 = vunpack.c.l.b16 %v340
  %v375 = vunpack.c.l.b16 %v341
  %v376 = vunpack.c.l.b16 %v342
  %v377 = vunpack.c.l.b16 %v343
  %v378 = vpack.c.b16 %v367, %v366
  %v379 = vpack.c.b16 %v369, %v368
  %v380 = vpack.c.b16 %v371, %v370
  %v381 = vpack.c.b16 %v373, %v372
  %v382 = vpack.c.b16 %v375, %v374
  %v383 = vpack.c.b16 %v377, %v376
  %vm390 = vcmask 785408
  %v392 = vsel %vm390, %v352, 0
  %v395 = vsel %vm390, %v353, 0
  %397 = vmatprep.subr.bf16.mxu0 0
  %398 = vmatpush1.bf16.msra.mxu0 %v378
  %399 = vmatprep.subr.bf16.mxu0 0
  %400 = vmatpush1.bf16.msra.mxu0 %v379
  %401 = vmatprep.subr.bf16.mxu0 0
  %402 = vmatpush1.bf16.msra.mxu0 %v380
  %403 = vmatprep.subr.bf16.mxu0 0
  %404 = vmatpush1.bf16.msra.mxu0 %v381
  %405 = vmatprep.subr.bf16.mxu0 0
  %406 = vmatpush1.bf16.msra.mxu0 %v382
  %407 = vmatprep.subr.bf16.mxu0 0
  %408 = vmatpush1.bf16.msra.mxu0 %v383
  %409 = vmatprep.subr.bf16.mxu0 0
  %410 = vmatpush1.bf16.msra.mxu0 0
  %411 = vmatprep.subr.bf16.mxu0 0
  %412 = vmatpush1.bf16.msra.mxu0 0
  %413 = vmatprep.subr.bf16.mxu0 0
  %414 = vmatpush1.bf16.msra.mxu0 0
  %415 = vmatprep.subr.bf16.mxu0 0
  %416 = vmatpush1.bf16.msra.mxu0 0
  %417 = vmatprep.subr.bf16.mxu0 0
  %418 = vmatpush1.bf16.msra.mxu0 0
  %419 = vmatprep.subr.bf16.mxu0 0
  %420 = vmatpush1.bf16.msra.mxu0 0
  %421 = vmatprep.subr.bf16.mxu0 0
  %422 = vmatpush1.bf16.msra.mxu0 0
  %423 = vmatprep.subr.bf16.mxu0 0
  %424 = vmatpush1.bf16.msra.mxu0 0
  %425 = vmatprep.subr.bf16.mxu0 0
  %426 = vmatpush1.bf16.msra.mxu0 0
  %427 = vmatprep.subr.bf16.mxu0 0
  %428 = vmatpush1.bf16.msra.mxu0 0
  %429 = vmatprep.mubr.bf16.mxu0 0
  %430 = vmatmul.mubr.bf16.gmra.mrb[0].mxu0 %v392
  %v431 = vpop.f32.mrb[0].mxu0
  %v432 = vadd.f32 0.0, %v431
  %v433 = vpop.f32.mrb[0].mxu0
  %v434 = vpop.f32.mrb[0].mxu0
  %v435 = vadd.f32 0.0, %v434
  %v436 = vpop.f32.mrb[0].mxu0
  %437 = vmatprep.mubr.bf16.mxu0 0
  %438 = vmatmul.mubr.bf16.gmra.mrb[0].mxu0 %v395
  %v439 = vpop.f32.mrb[0].mxu0
  %v440 = vadd.f32 0.0, %v439
  %v441 = vpop.f32.mrb[0].mxu0
  %v442 = vpop.f32.mrb[0].mxu0
  %v443 = vadd.f32 0.0, %v442
  %v444 = vpop.f32.mrb[0].mxu0
  %445 = vdwg.mxu0
  %v446 = vlaneseq
  %v447 = vshrl.u32 %v446, 7
  %v448 = vsub.s32 0, %v447
  %v449 = vrot.slane %v39, %v448
  %v450 = vlaneseq
  %v451 = vshrl.u32 %v450, 7
  %v452 = vsub.s32 0, %v451
  %v453 = vrot.slane %v40, %v452
  %v454 = vlaneseq
  %v455 = vshrl.u32 %v454, 7
  %v456 = vsub.s32 0, %v455
  %v457 = vrot.slane %v41, %v456
  %v458 = vlaneseq
  %v459 = vshrl.u32 %v458, 7
  %v460 = vsub.s32 0, %v459
  %v461 = vrot.slane %v42, %v460
  %v462 = vmul.f32 %v432, %v449
  %v463 = vmul.f32 %v435, %v453
  %v464 = vmul.f32 %v440, %v457
  %v465 = vmul.f32 %v443, %v461
  %v466 = vlaneseq
  %v467 = vshrl.u32 %v466, 7
  %v468 = vsub.s32 0, %v467
  %v469 = vrot.slane %v43, %v468
  %v470 = vlaneseq
  %v471 = vshrl.u32 %v470, 7
  %v472 = vsub.s32 0, %v471
  %v473 = vrot.slane %v44, %v472
  %v474 = vlaneseq
  %v475 = vshrl.u32 %v474, 7
  %v476 = vsub.s32 0, %v475
  %v477 = vrot.slane %v45, %v476
  %v478 = vlaneseq
  %v479 = vshrl.u32 %v478, 7
  %v480 = vsub.s32 0, %v479
  %v481 = vrot.slane %v46, %v480
  %v482 = vadd.f32 %v462, %v469
  %v483 = vadd.f32 %v463, %v473
  %v484 = vadd.f32 %v464, %v477
  %v485 = vadd.f32 %v465, %v481
  %v486 = vmax.f32 %v482, 0.0
  %v487 = vmax.f32 %v483, 0.0
  %v488 = vmax.f32 %v484, 0.0
  %v489 = vmax.f32 %v485, 0.0
  %v490 = vpack.c.bf16 %v487, %v486
  %v491 = vpack.c.bf16 %v489, %v488
  %v492 = vld [vmem:[%s3] sm:$0xf]
  %v493 = vld [vmem:[%s3 + $0x4] sm:$0xf]
  %v494 = vld [vmem:[%s3 + $0x8] sm:$0xf]
  %v495 = vld [vmem:[%s3 + $0xc] sm:$0xf]
  %v500 = vunpack.c.l.b16 %v492
  %v501 = vunpack.c.l.b16 %v493
  %v502 = vunpack.c.l.b16 %v494
  %v503 = vunpack.c.l.b16 %v495
  %v504 = vpack.c.b16 %v501, %v500
  %v505 = vpack.c.b16 %v503, %v502
  %v509 = vsel %vm310, %v490, 0
  %v512 = vsel %vm310, %v491, 0
  %514 = vmatprep.subr.bf16.mxu0 0
  %515 = vmatpush1.bf16.msra.mxu0 %v504
  %516 = vmatprep.subr.bf16.mxu0 0
  %517 = vmatpush1.bf16.msra.mxu0 %v505
  %518 = vmatprep.subr.bf16.mxu0 0
  %519 = vmatpush1.bf16.msra.mxu0 0
  %520 = vmatprep.subr.bf16.mxu0 0
  %521 = vmatpush1.bf16.msra.mxu0 0
  %522 = vmatprep.subr.bf16.mxu0 0
  %523 = vmatpush1.bf16.msra.mxu0 0
  %524 = vmatprep.subr.bf16.mxu0 0
  %525 = vmatpush1.bf16.msra.mxu0 0
  %526 = vmatprep.subr.bf16.mxu0 0
  %527 = vmatpush1.bf16.msra.mxu0 0
  %528 = vmatprep.subr.bf16.mxu0 0
  %529 = vmatpush1.bf16.msra.mxu0 0
  %530 = vmatprep.subr.bf16.mxu0 0
  %531 = vmatpush1.bf16.msra.mxu0 0
  %532 = vmatprep.subr.bf16.mxu0 0
  %533 = vmatpush1.bf16.msra.mxu0 0
  %534 = vmatprep.subr.bf16.mxu0 0
  %535 = vmatpush1.bf16.msra.mxu0 0
  %536 = vmatprep.subr.bf16.mxu0 0
  %537 = vmatpush1.bf16.msra.mxu0 0
  %538 = vmatprep.subr.bf16.mxu0 0
  %539 = vmatpush1.bf16.msra.mxu0 0
  %540 = vmatprep.subr.bf16.mxu0 0
  %541 = vmatpush1.bf16.msra.mxu0 0
  %542 = vmatprep.subr.bf16.mxu0 0
  %543 = vmatpush1.bf16.msra.mxu0 0
  %544 = vmatprep.subr.bf16.mxu0 0
  %545 = vmatpush1.bf16.msra.mxu0 0
  %546 = vmatprep.mubr.bf16.mxu0 0
  %547 = vmatmul.mubr.bf16.gmra.mrb[0].mxu0 %v509
  %v548 = vpop.f32.mrb[0].mxu0
  %v549 = vadd.f32 0.0, %v548
  %v550 = vpop.f32.mrb[0].mxu0
  %v551 = vpop.f32.mrb[0].mxu0
  %v552 = vadd.f32 0.0, %v551
  %v553 = vpop.f32.mrb[0].mxu0
  %554 = vmatprep.mubr.bf16.mxu0 0
  %555 = vmatmul.mubr.bf16.gmra.mrb[0].mxu0 %v512
  %v556 = vpop.f32.mrb[0].mxu0
  %v557 = vadd.f32 0.0, %v556
  %v558 = vpop.f32.mrb[0].mxu0
  %v559 = vpop.f32.mrb[0].mxu0
  %v560 = vadd.f32 0.0, %v559
  %v561 = vpop.f32.mrb[0].mxu0
  %562 = vdwg.mxu0
  %v563 = vlaneseq
  %v564 = vshrl.u32 %v563, 7
  %v565 = vsub.s32 0, %v564
  %v566 = vrot.slane %v47, %v565
  %v567 = vlaneseq
  %v568 = vshrl.u32 %v567, 7
  %v569 = vsub.s32 0, %v568
  %v570 = vrot.slane %v48, %v569
  %v571 = vlaneseq
  %v572 = vshrl.u32 %v571, 7
  %v573 = vsub.s32 0, %v572
  %v574 = vrot.slane %v49, %v573
  %v575 = vlaneseq
  %v576 = vshrl.u32 %v575, 7
  %v577 = vsub.s32 0, %v576
  %v578 = vrot.slane %v50, %v577
  %v579 = vmul.f32 %v549, %v566
  %v580 = vmul.f32 %v552, %v570
  %v581 = vmul.f32 %v557, %v574
  %v582 = vmul.f32 %v560, %v578
  %v583 = vlaneseq
  %v584 = vshrl.u32 %v583, 7
  %v585 = vsub.s32 0, %v584
  %v586 = vrot.slane %v51, %v585
  %v587 = vlaneseq
  %v588 = vshrl.u32 %v587, 7
  %v589 = vsub.s32 0, %v588
  %v590 = vrot.slane %v52, %v589
  %v591 = vlaneseq
  %v592 = vshrl.u32 %v591, 7
  %v593 = vsub.s32 0, %v592
  %v594 = vrot.slane %v53, %v593
  %v595 = vlaneseq
  %v596 = vshrl.u32 %v595, 7
  %v597 = vsub.s32 0, %v596
  %v598 = vrot.slane %v54, %v597
  %v599 = vadd.f32 %v579, %v586
  %v600 = vadd.f32 %v580, %v590
  %v601 = vadd.f32 %v581, %v594
  %v602 = vadd.f32 %v582, %v598
  %v603 = vunpack.c.l.bf16 %v27
  %v604 = vunpack.c.l.bf16 %v28
  %v605 = vunpack.c.l.bf16 %v29
  %v606 = vunpack.c.l.bf16 %v30
  %v607 = vadd.f32 %v599, %v603
  %v608 = vadd.f32 %v600, %v604
  %v609 = vadd.f32 %v601, %v605
  %v610 = vadd.f32 %v602, %v606
  %v611 = vmax.f32 %v607, 0.0
  %v612 = vmax.f32 %v608, 0.0
  %v613 = vmax.f32 %v609, 0.0
  %v614 = vmax.f32 %v610, 0.0
  %615 = vst [vmem:[%s7] sm:$0xff] %v611
  %616 = vst [vmem:[%s7 + $0x8] sm:$0xff] %v612
  %617 = vst [vmem:[%s7 + $0x10] sm:$0xff] %v613
  %618 = vst [vmem:[%s7 + $0x18] sm:$0xff] %v614
  // Predicated region
  $region30: #{_lambda_.1} parent=0 // pred_check
    _
  $region31: #{_lambda_.1} parent=0 // pred_check_branch
    %620 = sbr.rel (0) target = $region33
  $region32: #{_lambda_.1} parent=0 // pred_region
    _
  $region33: #{_lambda_.1} parent=0 // pred_fallthru
    _
  // Predicated region
  $region34: #{_lambda_.1} parent=0 // pred_check
    _
  $region35: #{_lambda_.1} parent=0 // pred_check_branch
    %622 = sbr.rel (0) target = $region37
  $region36: #{_lambda_.1} parent=0 // pred_region
    _
  $region37: #{_lambda_.1} parent=0 // pred_fallthru
    _

</llo_original>
